<compile_context>
chip_gen: v5e
topology: v5e:2x2
jax: 0.10.0
libtpu: 0.0.40
codegen_flags: <defaults>
</compile_context>

<pallas_src>
import jax
import jax.numpy as jnp
from jax.experimental import pallas as pl
from jax.experimental.pallas import tpu as pltpu


# ----------------------------- model dimensions -----------------------------
BATCH       = 8
N_INPUT     = 128                 # already lane-aligned
HIDDEN      = [64, 32]            # hidden_topology
N_OUTPUT    = 8                   # n_outputs
PAD         = 128                 # lane-dense width for every layer output
TOPOLOGY    = [N_INPUT] + HIDDEN + [N_OUTPUT]
N_LAYERS    = len(TOPOLOGY) - 1   # 3 linear layers
LEAKY_SLOPE = 0.01                # nn.LeakyReLU default negative_slope


# --------------------------------- kernel -----------------------------------
def mlp_kernel(x_ref, w_ref, b_ref, out_ref):
    # x_ref: (BATCH, 128) f32, w_ref: (L, 128, 128) bf16, b_ref: (L, 1, 128) f32
    h = x_ref[...]                                            # f32 activations

    # Hidden layers: Linear + LeakyReLU (+ Dropout == identity at inference).
    # Padded columns stay exactly zero (zero weights/bias, LeakyReLU(0) == 0).
    for i in range(N_LAYERS - 1):
        y = jnp.dot(h.astype(jnp.bfloat16), w_ref[i],
                    preferred_element_type=jnp.float32) + b_ref[i]
        h = jnp.where(y > 0.0, y, LEAKY_SLOPE * y)            # LeakyReLU in f32

    # Output layer: Linear + Sigmoid (binary=True).
    y = jnp.dot(h.astype(jnp.bfloat16), w_ref[N_LAYERS - 1],
                preferred_element_type=jnp.float32) + b_ref[N_LAYERS - 1]
    out_ref[...] = 1.0 / (1.0 + jnp.exp(-y))                  # lane-dense (8,128) store


# --------------------------------- wrapper ----------------------------------
@jax.jit
def mlp_forward(x, w_slab, b_slab):
    vmem = pl.BlockSpec(memory_space=pltpu.MemorySpace.VMEM)
    flops = 2 * BATCH * sum(TOPOLOGY[i] * TOPOLOGY[i + 1] for i in range(N_LAYERS))
    out_pad = pl.pallas_call(
        mlp_kernel,
        out_shape=jax.ShapeDtypeStruct((BATCH, PAD), jnp.float32),
        in_specs=[vmem, vmem, vmem],
        out_specs=vmem,
        cost_estimate=pl.CostEstimate(
            flops=flops,
            transcendentals=BATCH * PAD,                       # sigmoid exp
            bytes_accessed=(x.size * 4 + w_slab.size * 2
                            + b_slab.size * 4 + BATCH * PAD * 4)),
    )(x, w_slab, b_slab)
    # Slice the lane-padded output back to the true n_outputs columns.
    return out_pad[:, :N_OUTPUT]


# ---------------------- deterministic parameter init ------------------------
def xavier_uniform(key, fan_in, fan_out):
    # torch.nn.init.xavier_uniform_ bound; stored as (in, out) so y = x @ W + b.
    bound = jnp.sqrt(6.0 / (fan_in + fan_out))
    return jax.random.uniform(key, (fan_in, fan_out), jnp.float32, -bound, bound)


def init_params(key):
    ws, bs = [], []
    keys = jax.random.split(key, 2 * N_LAYERS)
    for i in range(N_LAYERS):
        fan_in, fan_out = TOPOLOGY[i], TOPOLOGY[i + 1]
        ws.append(xavier_uniform(keys[2 * i], fan_in, fan_out))
        bb = 1.0 / jnp.sqrt(fan_in)   # torch nn.Linear default bias init
        bs.append(jax.random.uniform(keys[2 * i + 1], (fan_out,), jnp.float32, -bb, bb))
    return ws, bs


def pack_params(ws, bs):
    """Zero-pad every layer to (128, 128) and stack into single slabs."""
    w_slab = jnp.zeros((N_LAYERS, PAD, PAD), jnp.float32)
    b_slab = jnp.zeros((N_LAYERS, 1, PAD), jnp.float32)
    for i in range(N_LAYERS):
        fan_in, fan_out = TOPOLOGY[i], TOPOLOGY[i + 1]
        w_slab = w_slab.at[i, :fan_in, :fan_out].set(ws[i])
        b_slab = b_slab.at[i, 0, :fan_out].set(bs[i])
    return w_slab.astype(jnp.bfloat16), b_slab            # weights bf16, biases f32


# ------------------------------ reference (JAX) ------------------------------
def reference_forward(x, ws, bs):
    # Same bf16-operand / f32-accumulate contract as the kernel.
    h = x
    for i in range(N_LAYERS - 1):
        y = jnp.dot(h.astype(jnp.bfloat16), ws[i].astype(jnp.bfloat16),
                    preferred_element_type=jnp.float32) + bs[i]
        h = jnp.where(y > 0.0, y, LEAKY_SLOPE * y)
    y = jnp.dot(h.astype(jnp.bfloat16), ws[-1].astype(jnp.bfloat16),
                preferred_element_type=jnp.float32) + bs[-1]
    return jax.nn.sigmoid(y)


if __name__ == "__main__":
    key = jax.random.PRNGKey(0)
    k_x, k_p = jax.random.split(key)

    # methylation-beta-like inputs in [0, 1]
    x = jax.random.uniform(k_x, (BATCH, N_INPUT), jnp.float32)
    ws, bs = init_params(k_p)
    w_slab, b_slab = pack_params(ws, bs)

    out = mlp_forward(x, w_slab, b_slab)
    jax.block_until_ready(out)

    ref = reference_forward(x, ws, bs)
    assert out.shape == (BATCH, N_OUTPUT)
    assert jnp.allclose(out, ref, atol=1e-3, rtol=1e-3), float(jnp.max(jnp.abs(out - ref)))

    print("KERNEL_OK")
</pallas_src>

<mosaic_0001>
module attributes {stable_mosaic.version = 11 : i64} {
  func.func @mlp_kernel(%arg0: memref<8x128xf32, #tpu.memory_space<vmem>>, %arg1: memref<3x128x128xbf16, #tpu.memory_space<vmem>>, %arg2: memref<3x1x128xf32, #tpu.memory_space<vmem>>, %arg3: memref<8x128xf32, #tpu.memory_space<vmem>>) attributes {dimension_semantics = [], scalar_prefetch = 0 : i64, scratch_operands = 0 : i64, tpu.core_type = #tpu.core_type<tc>} {
    %c0 = arith.constant 0 : index
    %c0_0 = arith.constant 0 : index
    %0 = vector.load %arg0[%c0, %c0_0] : memref<8x128xf32, #tpu.memory_space<vmem>>, vector<8x128xf32>
    %1 = arith.truncf %0 : vector<8x128xf32> to vector<8x128xbf16>
    %c0_1 = arith.constant 0 : index
    %c0_2 = arith.constant 0 : index
    %c0_3 = arith.constant 0 : index
    %2 = vector.load %arg1[%c0_1, %c0_2, %c0_3] : memref<3x128x128xbf16, #tpu.memory_space<vmem>>, vector<1x128x128xbf16>
    %3 = vector.shape_cast %2 : vector<1x128x128xbf16> to vector<128x128xbf16>
    %cst = arith.constant dense<0.000000e+00> : vector<8x128xf32>
    %4 = tpu.matmul %1, %3, %cst {dimension_numbers = #tpu.dot_dimension_numbers<[1], [0], [0], [1], [0, 0, 1, 1], [], []>} : vector<8x128xbf16>, vector<128x128xbf16>, vector<8x128xf32> -> vector<8x128xf32>
    %c0_4 = arith.constant 0 : index
    %c0_5 = arith.constant 0 : index
    %c0_6 = arith.constant 0 : index
    %5 = vector.load %arg2[%c0_4, %c0_5, %c0_6] : memref<3x1x128xf32, #tpu.memory_space<vmem>>, vector<1x1x128xf32>
    %6 = vector.shape_cast %5 : vector<1x1x128xf32> to vector<1x128xf32>
    %7 = vector.broadcast %6 : vector<1x128xf32> to vector<8x128xf32>
    %8 = arith.addf %4, %7 : vector<8x128xf32>
    %cst_7 = arith.constant 0.000000e+00 : f32
    %9 = vector.broadcast %cst_7 : f32 to vector<8x128xf32>
    %10 = arith.cmpf ogt, %8, %9 : vector<8x128xf32>
    %cst_8 = arith.constant 0.00999999977 : f32
    %11 = vector.broadcast %cst_8 : f32 to vector<8x128xf32>
    %12 = arith.mulf %11, %8 : vector<8x128xf32>
    %13 = arith.select %10, %8, %12 : vector<8x128xi1>, vector<8x128xf32>
    %14 = arith.truncf %13 : vector<8x128xf32> to vector<8x128xbf16>
    %c1 = arith.constant 1 : index
    %c0_9 = arith.constant 0 : index
    %c0_10 = arith.constant 0 : index
    %15 = vector.load %arg1[%c1, %c0_9, %c0_10] : memref<3x128x128xbf16, #tpu.memory_space<vmem>>, vector<1x128x128xbf16>
    %16 = vector.shape_cast %15 : vector<1x128x128xbf16> to vector<128x128xbf16>
    %cst_11 = arith.constant dense<0.000000e+00> : vector<8x128xf32>
    %17 = tpu.matmul %14, %16, %cst_11 {dimension_numbers = #tpu.dot_dimension_numbers<[1], [0], [0], [1], [0, 0, 1, 1], [], []>} : vector<8x128xbf16>, vector<128x128xbf16>, vector<8x128xf32> -> vector<8x128xf32>
    %c1_12 = arith.constant 1 : index
    %c0_13 = arith.constant 0 : index
    %c0_14 = arith.constant 0 : index
    %18 = vector.load %arg2[%c1_12, %c0_13, %c0_14] : memref<3x1x128xf32, #tpu.memory_space<vmem>>, vector<1x1x128xf32>
    %19 = vector.shape_cast %18 : vector<1x1x128xf32> to vector<1x128xf32>
    %20 = vector.broadcast %19 : vector<1x128xf32> to vector<8x128xf32>
    %21 = arith.addf %17, %20 : vector<8x128xf32>
    %cst_15 = arith.constant 0.000000e+00 : f32
    %22 = vector.broadcast %cst_15 : f32 to vector<8x128xf32>
    %23 = arith.cmpf ogt, %21, %22 : vector<8x128xf32>
    %cst_16 = arith.constant 0.00999999977 : f32
    %24 = vector.broadcast %cst_16 : f32 to vector<8x128xf32>
    %25 = arith.mulf %24, %21 : vector<8x128xf32>
    %26 = arith.select %23, %21, %25 : vector<8x128xi1>, vector<8x128xf32>
    %27 = arith.truncf %26 : vector<8x128xf32> to vector<8x128xbf16>
    %c2 = arith.constant 2 : index
    %c0_17 = arith.constant 0 : index
    %c0_18 = arith.constant 0 : index
    %28 = vector.load %arg1[%c2, %c0_17, %c0_18] : memref<3x128x128xbf16, #tpu.memory_space<vmem>>, vector<1x128x128xbf16>
    %29 = vector.shape_cast %28 : vector<1x128x128xbf16> to vector<128x128xbf16>
    %cst_19 = arith.constant dense<0.000000e+00> : vector<8x128xf32>
    %30 = tpu.matmul %27, %29, %cst_19 {dimension_numbers = #tpu.dot_dimension_numbers<[1], [0], [0], [1], [0, 0, 1, 1], [], []>} : vector<8x128xbf16>, vector<128x128xbf16>, vector<8x128xf32> -> vector<8x128xf32>
    %c2_20 = arith.constant 2 : index
    %c0_21 = arith.constant 0 : index
    %c0_22 = arith.constant 0 : index
    %31 = vector.load %arg2[%c2_20, %c0_21, %c0_22] : memref<3x1x128xf32, #tpu.memory_space<vmem>>, vector<1x1x128xf32>
    %32 = vector.shape_cast %31 : vector<1x1x128xf32> to vector<1x128xf32>
    %33 = vector.broadcast %32 : vector<1x128xf32> to vector<8x128xf32>
    %34 = arith.addf %30, %33 : vector<8x128xf32>
    %cst_23 = arith.constant 0.000000e+00 : f32
    %35 = vector.broadcast %cst_23 : f32 to vector<8x128xf32>
    %36 = arith.subf %35, %34 : vector<8x128xf32>
    %37 = math.exp %36 : vector<8x128xf32>
    %cst_24 = arith.constant 1.000000e+00 : f32
    %38 = vector.broadcast %cst_24 : f32 to vector<8x128xf32>
    %39 = arith.addf %38, %37 : vector<8x128xf32>
    %cst_25 = arith.constant 1.000000e+00 : f32
    %40 = vector.broadcast %cst_25 : f32 to vector<8x128xf32>
    %41 = arith.divf %40, %39 : vector<8x128xf32>
    %c0_26 = arith.constant 0 : index
    %c0_27 = arith.constant 0 : index
    %42 = vector.load %arg3[%c0_26, %c0_27] : memref<8x128xf32, #tpu.memory_space<vmem>>, vector<8x128xf32>
    tpu.vector_store %arg3[%c0_26, %c0_27], %41 {strides = array<i32>} : memref<8x128xf32, #tpu.memory_space<vmem>>, vector<8x128xf32>,
    return
  }
}

</mosaic_0001>

<llo_original>
// kernel: mlp_forward.1
$region0: #{mlp_forward.1}
  #allocation0 [shape = 'u32[]', space=smem, size = 0x4, offset = 0x4, fixed_abs, tag = 'smem constant byte address 0x4 - core index']
  #allocation1 [shape = 'u32[72,128]{1,0:T(1,128)}', space=vmem, size = 0x9000, scoped, tag = 'internal scratch']
  %s0 = inlined_call_operand.hbm [shape: f32[8,128], index: 0, kind: input, shape index: {}]
  %s1 = inlined_call_operand.hbm [shape: bf16[3,128,128], index: 1, kind: input, shape index: {}]
  %s2 = inlined_call_operand.hbm [shape: f32[3,1,128], index: 2, kind: input, shape index: {}]
  %s3 = inlined_call_operand.hbm [shape: f32[8,128], index: 3, kind: output, shape index: {}]
  %s4 = sld [smem:[#allocation0]]
  $region34: #{mlp_forward.1} parent=0
    _
  %s6 = ssub.s32 1, %s4
  %s7 = scalar_select 0, %s6, %s4
  $region1: #{mlp_forward.1} parent=0
    #allocation2 [shape = 'u8[4096]{0}', space=vmem, size = 0x1000, scoped, tag = 'input window, operand 0, single buffered']
    #allocation3 [shape = 's32[1]{0}', space=sflag, size = 0x4, scoped, tag = 'scoped memory for mlp_forward.1']
    #allocation4 [shape = 's32[1]{0}', space=sflag, size = 0x4, scoped, tag = 'scoped memory for mlp_forward.1']
    #allocation5 [shape = 'u8[98304]{0}', space=vmem, size = 0x18000, scoped, tag = 'input window, operand 1, single buffered']
    #allocation6 [shape = 's32[1]{0}', space=sflag, size = 0x4, scoped, tag = 'scoped memory for mlp_forward.1']
    #allocation7 [shape = 'u8[1536]{0}', space=vmem, size = 0x800, scoped, tag = 'input window, operand 2, single buffered']
    #allocation8 [shape = 'u8[4096]{0}', space=vmem, size = 0x1000, scoped, tag = 'output window, operand 0, single buffered']
    %8 = vsyncpa [#allocation3], 0
    %9 = vsyncpa [#allocation6], 0
    %10 = vsyncpa [#allocation4], 0
    // Predicated region
    $region2: #{mlp_forward.1} parent=1 // pred_check
      _
    $region3: #{mlp_forward.1} parent=1 // pred_check_branch
      %12 = sbr.rel (0) target = $region5
    $region4: #{mlp_forward.1} parent=1 // pred_region
      %14 = vsyncadd [#allocation3], 0
      %s16 = sshll.u32 %s0, 4
      %s17 = int_to_ptr.hbm [resolvable:$true] %s16
      %s18 = sshll.u32 [#allocation2], 4
      %s19 = int_to_ptr.vmem [resolvable:$true] %s18
      %21 = dma.hbm_to_vmem [thread:$0]  %s17, 128, %s19, [#allocation3]
    $region5: #{mlp_forward.1} parent=1 // pred_fallthru
      _
    // Predicated region
    $region6: #{mlp_forward.1} parent=1 // pred_check
      _
    $region7: #{mlp_forward.1} parent=1 // pred_check_branch
      %23 = sbr.rel (0) target = $region9
    $region8: #{mlp_forward.1} parent=1 // pred_region
      %25 = vsyncadd [#allocation6], 0
      %s26 = sshll.u32 %s1, 4
      %s27 = int_to_ptr.hbm [resolvable:$true] %s26
      %s28 = sshll.u32 [#allocation5], 4
      %s29 = int_to_ptr.vmem [resolvable:$true] %s28
      %34 = dma.hbm_to_vmem [thread:$0]  %s27, 3072, %s29, [#allocation6], 64, 64, 4
    $region9: #{mlp_forward.1} parent=1 // pred_fallthru
      _
    // Predicated region
    $region10: #{mlp_forward.1} parent=1 // pred_check
      _
    $region11: #{mlp_forward.1} parent=1 // pred_check_branch
      %36 = sbr.rel (0) target = $region13
    $region12: #{mlp_forward.1} parent=1 // pred_region
      %38 = vsyncadd [#allocation6], 0
      %s39 = sshll.u32 %s2, 4
      %s40 = int_to_ptr.hbm [resolvable:$true] %s39
      %s41 = sshll.u32 [#allocation7], 4
      %s42 = int_to_ptr.vmem [resolvable:$true] %s41
      %47 = dma.hbm_to_vmem [thread:$0]  %s40, 48, %s42, [#allocation6], 16, 16, 1
    $region13: #{mlp_forward.1} parent=1 // pred_fallthru
      _
    // Predicated region
    $region14: #{mlp_forward.1} parent=1 // pred_check
      _
    $region15: #{mlp_forward.1} parent=1 // pred_check_branch
      %49 = sbr.rel (0) target = $region17
    $region16: #{mlp_forward.1} parent=1 // pred_region
      %51 = dma.done [#allocation3], 128
    $region17: #{mlp_forward.1} parent=1 // pred_fallthru
      _
    // Predicated region
    $region18: #{mlp_forward.1} parent=1 // pred_check
      _
    $region19: #{mlp_forward.1} parent=1 // pred_check_branch
      %53 = sbr.rel (0) target = $region21
    $region20: #{mlp_forward.1} parent=1 // pred_region
      %55 = dma.done [#allocation6], 3072
    $region21: #{mlp_forward.1} parent=1 // pred_fallthru
      _
    // Predicated region
    $region22: #{mlp_forward.1} parent=1 // pred_check
      _
    $region23: #{mlp_forward.1} parent=1 // pred_check_branch
      %57 = sbr.rel (0) target = $region25
    $region24: #{mlp_forward.1} parent=1 // pred_region
      %59 = dma.done [#allocation6], 48
    $region25: #{mlp_forward.1} parent=1 // pred_fallthru
      _
    %v60 = vld [vmem:[#allocation2] sm:$0xff]
    %v61 = vpack.c.bf16 %v60, %v60
    %v62 = vld [vmem:[#allocation5] sm:$0xf]
    %v63 = vld [vmem:[#allocation5 + $0x4] sm:$0xf]
    %v64 = vld [vmem:[#allocation5 + $0x8] sm:$0xf]
    %v65 = vld [vmem:[#allocation5 + $0xc] sm:$0xf]
    %v66 = vld [vmem:[#allocation5 + $0x10] sm:$0xf]
    %v67 = vld [vmem:[#allocation5 + $0x14] sm:$0xf]
    %v68 = vld [vmem:[#allocation5 + $0x18] sm:$0xf]
    %v69 = vld [vmem:[#allocation5 + $0x1c] sm:$0xf]
    %v70 = vld [vmem:[#allocation5 + $0x20] sm:$0xf]
    %v71 = vld [vmem:[#allocation5 + $0x24] sm:$0xf]
    %v72 = vld [vmem:[#allocation5 + $0x28] sm:$0xf]
    %v73 = vld [vmem:[#allocation5 + $0x2c] sm:$0xf]
    %v74 = vld [vmem:[#allocation5 + $0x30] sm:$0xf]
    %v75 = vld [vmem:[#allocation5 + $0x34] sm:$0xf]
    %v76 = vld [vmem:[#allocation5 + $0x38] sm:$0xf]
    %v77 = vld [vmem:[#allocation5 + $0x3c] sm:$0xf]
    %v78 = vld [vmem:[#allocation7] sm:$0x1]
    %v80 = vperm.slane %v78, 0
    %v98 = vunpack.c.l.b16 %v62
    %v99 = vunpack.c.l.b16 %v63
    %v100 = vunpack.c.l.b16 %v64
    %v101 = vunpack.c.l.b16 %v65
    %v102 = vunpack.c.l.b16 %v66
    %v103 = vunpack.c.l.b16 %v67
    %v104 = vunpack.c.l.b16 %v68
    %v105 = vunpack.c.l.b16 %v69
    %v106 = vunpack.c.l.b16 %v70
    %v107 = vunpack.c.l.b16 %v71
    %v108 = vunpack.c.l.b16 %v72
    %v109 = vunpack.c.l.b16 %v73
    %v110 = vunpack.c.l.b16 %v74
    %v111 = vunpack.c.l.b16 %v75
    %v112 = vunpack.c.l.b16 %v76
    %v113 = vunpack.c.l.b16 %v77
    %v114 = vpack.c.b16 %v99, %v98
    %v115 = vpack.c.b16 %v101, %v100
    %v116 = vpack.c.b16 %v103, %v102
    %v117 = vpack.c.b16 %v105, %v104
    %v118 = vpack.c.b16 %v107, %v106
    %v119 = vpack.c.b16 %v109, %v108
    %v120 = vpack.c.b16 %v111, %v110
    %v121 = vpack.c.b16 %v113, %v112
    %130 = vmatpush.bf16.msra.mxu0 %v121
    %131 = vmatpush.bf16.msra.mxu0 %v120
    %132 = vmatpush.bf16.msra.mxu0 %v119
    %133 = vmatpush.bf16.msra.mxu0 %v118
    %134 = vmatpush.bf16.msra.mxu0 %v117
    %135 = vmatpush.bf16.msra.mxu0 %v116
    %136 = vmatpush.bf16.msra.mxu0 %v115
    %137 = vmatpush.bf16.msra.mxu0 %v114
    %138 = vmatmul.bf16.gmra.mxu0 %v61
    %v139 = vpop.f32.mrf.mxu0
    %v140 = vadd.f32 %v80, %v139
    %v141 = vpop.f32.mrf.mxu0
    %142 = vdwg.mxu0
    %vm143 = vcmp.gt.f32.partialorder %v140, 0.0
    %v144 = vmul.f32 %v140, 0.01
    %v145 = vsel %vm143, %v140, %v144
    %v146 = vpack.c.bf16 %v145, %v145
    %s147 = scalar_lea.vmem [#allocation5], 64
    %v148 = vld [vmem:[%s147] sm:$0xf]
    %v149 = vld [vmem:[%s147 + $0x4] sm:$0xf]
    %v150 = vld [vmem:[%s147 + $0x8] sm:$0xf]
    %v151 = vld [vmem:[%s147 + $0xc] sm:$0xf]
    %v152 = vld [vmem:[%s147 + $0x10] sm:$0xf]
    %v153 = vld [vmem:[%s147 + $0x14] sm:$0xf]
    %v154 = vld [vmem:[%s147 + $0x18] sm:$0xf]
    %v155 = vld [vmem:[%s147 + $0x1c] sm:$0xf]
    %v156 = vld [vmem:[%s147 + $0x20] sm:$0xf]
    %v157 = vld [vmem:[%s147 + $0x24] sm:$0xf]
    %v158 = vld [vmem:[%s147 + $0x28] sm:$0xf]
    %v159 = vld [vmem:[%s147 + $0x2c] sm:$0xf]
    %v160 = vld [vmem:[%s147 + $0x30] sm:$0xf]
    %v161 = vld [vmem:[%s147 + $0x34] sm:$0xf]
    %v162 = vld [vmem:[%s147 + $0x38] sm:$0xf]
    %v163 = vld [vmem:[%s147 + $0x3c] sm:$0xf]
    %s164 = scalar_lea.vmem [#allocation7], 1
    %v165 = vld [vmem:[%s164] sm:$0x1]
    %v167 = vperm.slane %v165, 0
    %v185 = vunpack.c.l.b16 %v148
    %v186 = vunpack.c.l.b16 %v149
    %v187 = vunpack.c.l.b16 %v150
    %v188 = vunpack.c.l.b16 %v151
    %v189 = vunpack.c.l.b16 %v152
    %v190 = vunpack.c.l.b16 %v153
    %v191 = vunpack.c.l.b16 %v154
    %v192 = vunpack.c.l.b16 %v155
    %v193 = vunpack.c.l.b16 %v156
    %v194 = vunpack.c.l.b16 %v157
    %v195 = vunpack.c.l.b16 %v158
    %v196 = vunpack.c.l.b16 %v159
    %v197 = vunpack.c.l.b16 %v160
    %v198 = vunpack.c.l.b16 %v161
    %v199 = vunpack.c.l.b16 %v162
    %v200 = vunpack.c.l.b16 %v163
    %v201 = vpack.c.b16 %v186, %v185
    %v202 = vpack.c.b16 %v188, %v187
    %v203 = vpack.c.b16 %v190, %v189
    %v204 = vpack.c.b16 %v192, %v191
    %v205 = vpack.c.b16 %v194, %v193
    %v206 = vpack.c.b16 %v196, %v195
    %v207 = vpack.c.b16 %v198, %v197
    %v208 = vpack.c.b16 %v200, %v199
    %217 = vmatpush.bf16.msra.mxu0 %v208
    %218 = vmatpush.bf16.msra.mxu0 %v207
    %219 = vmatpush.bf16.msra.mxu0 %v206
    %220 = vmatpush.bf16.msra.mxu0 %v205
    %221 = vmatpush.bf16.msra.mxu0 %v204
    %222 = vmatpush.bf16.msra.mxu0 %v203
    %223 = vmatpush.bf16.msra.mxu0 %v202
    %224 = vmatpush.bf16.msra.mxu0 %v201
    %225 = vmatmul.bf16.gmra.mxu0 %v146
    %v226 = vpop.f32.mrf.mxu0
    %v227 = vadd.f32 %v167, %v226
    %v228 = vpop.f32.mrf.mxu0
    %229 = vdwg.mxu0
    %vm230 = vcmp.gt.f32.partialorder %v227, 0.0
    %v231 = vmul.f32 %v227, 0.01
    %v232 = vsel %vm230, %v227, %v231
    %v233 = vpack.c.bf16 %v232, %v232
    %s234 = scalar_lea.vmem [#allocation5], 128
    %v235 = vld [vmem:[%s234] sm:$0xf]
    %v236 = vld [vmem:[%s234 + $0x4] sm:$0xf]
    %v237 = vld [vmem:[%s234 + $0x8] sm:$0xf]
    %v238 = vld [vmem:[%s234 + $0xc] sm:$0xf]
    %v239 = vld [vmem:[%s234 + $0x10] sm:$0xf]
    %v240 = vld [vmem:[%s234 + $0x14] sm:$0xf]
    %v241 = vld [vmem:[%s234 + $0x18] sm:$0xf]
    %v242 = vld [vmem:[%s234 + $0x1c] sm:$0xf]
    %v243 = vld [vmem:[%s234 + $0x20] sm:$0xf]
    %v244 = vld [vmem:[%s234 + $0x24] sm:$0xf]
    %v245 = vld [vmem:[%s234 + $0x28] sm:$0xf]
    %v246 = vld [vmem:[%s234 + $0x2c] sm:$0xf]
    %v247 = vld [vmem:[%s234 + $0x30] sm:$0xf]
    %v248 = vld [vmem:[%s234 + $0x34] sm:$0xf]
    %v249 = vld [vmem:[%s234 + $0x38] sm:$0xf]
    %v250 = vld [vmem:[%s234 + $0x3c] sm:$0xf]
    %s251 = scalar_lea.vmem [#allocation7], 2
    %v252 = vld [vmem:[%s251] sm:$0x1]
    %v254 = vperm.slane %v252, 0
    %v272 = vunpack.c.l.b16 %v235
    %v273 = vunpack.c.l.b16 %v236
    %v274 = vunpack.c.l.b16 %v237
    %v275 = vunpack.c.l.b16 %v238
    %v276 = vunpack.c.l.b16 %v239
    %v277 = vunpack.c.l.b16 %v240
    %v278 = vunpack.c.l.b16 %v241
    %v279 = vunpack.c.l.b16 %v242
    %v280 = vunpack.c.l.b16 %v243
    %v281 = vunpack.c.l.b16 %v244
    %v282 = vunpack.c.l.b16 %v245
    %v283 = vunpack.c.l.b16 %v246
    %v284 = vunpack.c.l.b16 %v247
    %v285 = vunpack.c.l.b16 %v248
    %v286 = vunpack.c.l.b16 %v249
    %v287 = vunpack.c.l.b16 %v250
    %v288 = vpack.c.b16 %v273, %v272
    %v289 = vpack.c.b16 %v275, %v274
    %v290 = vpack.c.b16 %v277, %v276
    %v291 = vpack.c.b16 %v279, %v278
    %v292 = vpack.c.b16 %v281, %v280
    %v293 = vpack.c.b16 %v283, %v282
    %v294 = vpack.c.b16 %v285, %v284
    %v295 = vpack.c.b16 %v287, %v286
    %304 = vmatpush.bf16.msra.mxu0 %v295
    %305 = vmatpush.bf16.msra.mxu0 %v294
    %306 = vmatpush.bf16.msra.mxu0 %v293
    %307 = vmatpush.bf16.msra.mxu0 %v292
    %308 = vmatpush.bf16.msra.mxu0 %v291
    %309 = vmatpush.bf16.msra.mxu0 %v290
    %310 = vmatpush.bf16.msra.mxu0 %v289
    %311 = vmatpush.bf16.msra.mxu0 %v288
    %312 = vmatmul.bf16.gmra.mxu0 %v233
    %v313 = vpop.f32.mrf.mxu0
    %v314 = vadd.f32 %v254, %v313
    %v315 = vpop.f32.mrf.mxu0
    %316 = vdwg.mxu0
    %v317 = vsub.f32 0.0, %v314
    %v318 = vmul.f32 %v317, 1.442695
    %v319 = vpow.pop %v318
    %v320 = vadd.f32 %v319, 1.0
    %v321 = vrcp.pop %v320
    %v322 = vmul.f32 %v320, %v321
    %v323 = vsub.f32 1.0, %v322
    %v324 = vmul.f32 %v321, %v323
    %v325 = vadd.f32 %v321, %v324
    %vm326 = vweird.f32 %v320
    %vm327 = vweird.f32 %v321
    %vm328 = vmor %vm326, %vm327
    %v329 = vsel %vm328, %v321, %v325
    %v330 = vand.u32 2147483647, %v320
    %vm331 = vcmp.eq.f32.partialorder %v330, 8.507059e+37
    %v332 = vand.u32 %v320, 2147483648
    %v333 = vor.u32 1.1754944e-38, %v332
    %v334 = vsel %vm331, %v333, %v329
    %v335 = vmul.f32 1.0, %v334
    %336 = vst [vmem:[#allocation8] sm:$0xff] %v335
    // Predicated region
    $region26: #{mlp_forward.1} parent=1 // pred_check
      _
    $region27: #{mlp_forward.1} parent=1 // pred_check_branch
      %338 = sbr.rel (0) target = $region29
    $region28: #{mlp_forward.1} parent=1 // pred_region
      %340 = vsyncadd [#allocation4], 0
      %s342 = sshll.u32 [#allocation8], 4
      %s343 = int_to_ptr.vmem [resolvable:$true] %s342
      %s344 = sshll.u32 %s3, 4
      %s345 = int_to_ptr.hbm [resolvable:$true] %s344
      %347 = dma.vmem_to_hbm [thread:$0]  %s343, 128, %s345, [#allocation4]
    $region29: #{mlp_forward.1} parent=1 // pred_fallthru
      _
    // Predicated region
    $region30: #{mlp_forward.1} parent=1 // pred_check
      _
    $region31: #{mlp_forward.1} parent=1 // pred_check_branch
      %349 = sbr.rel (0) target = $region33
    $region32: #{mlp_forward.1} parent=1 // pred_region
      %351 = dma.done [#allocation4], 128
    $region33: #{mlp_forward.1} parent=1 // pred_fallthru
      _
    %352 = vsyncpa [#allocation3], 1
    %353 = vsyncpa [#allocation6], 1
    %354 = vsyncpa [#allocation4], 1

</llo_original>
